<compile_context>
chip_gen: v6e
topology: v6e:2x2x1
jax: 0.10.0
libtpu: 0.0.40
codegen_flags: <defaults>
</compile_context>

<pallas_src>
import functools

import jax
import jax.numpy as jnp
from jax import lax
from jax.experimental import pallas as pl
from jax.experimental.pallas import tpu as pltpu

INPUT_DIM = 7            # len(Config.FEATURES)
DL_LAYERS = [128, 64, 32]
BN_EPS = 1e-5


def _round_up(n, m):
    return ((n + m - 1) // m) * m


def deep_feature_kernel(x_ref, w1_ref, b1_ref, w2_ref, b2_ref, w3_ref, b3_ref,
                        out_ref):
    """One batch tile: 3x (dot + bias + ReLU). BN already folded into W/b."""
    h = jnp.dot(x_ref[...], w1_ref[...],
                preferred_element_type=jnp.float32) + b1_ref[...]
    h = jnp.maximum(h, 0.0)

    h = jnp.dot(h, w2_ref[...],
                preferred_element_type=jnp.float32) + b2_ref[...]
    h = jnp.maximum(h, 0.0)

    h = jnp.dot(h, w3_ref[...],
                preferred_element_type=jnp.float32) + b3_ref[...]
    h = jnp.maximum(h, 0.0)

    out_ref[...] = h.astype(out_ref.dtype)


def fold_bn_params(params):
    """Fold eval-mode BatchNorm into the preceding Linear (host-side, once).

    params is the flat tuple (w, b, gamma, beta, mean, var) x 3 with Linear
    weights stored as (in, out). Returns (w1', b1', w2', b2', w3', b3').
    """
    folded = []
    for li in range(3):
        w, b, g, be, m, v = params[6 * li: 6 * (li + 1)]
        scale = g * lax.rsqrt(v + BN_EPS)            # (1, out)
        folded.append(w * scale)                     # (in, out) * (1, out)
        folded.append((b - m) * scale + be)          # (1, out)
    return tuple(folded)


@functools.partial(jax.jit, static_argnames=("tile_b",))
def deep_feature_extractor(x, folded_params, *, tile_b=2048):
    """x: (B, INPUT_DIM) float32. folded_params: (w1,b1,w2,b2,w3,b3)."""
    B = x.shape[0]
    # Tile the batch; keep the tile a multiple of 8 (sublane) and pad B up to
    # a whole number of tiles. Padded rows are garbage and sliced off below.
    tb = min(tile_b, _round_up(B, 8))
    Bp = _round_up(B, tb)
    if Bp != B:
        x = jnp.pad(x, ((0, Bp - B), (0, 0)))

    # Parameters (<50 KiB total): full-array blocks with a constant index_map
    # so they are loaded once and stay resident across all batch tiles.
    param_specs = [pl.BlockSpec(p.shape, lambda i: (0, 0))
                   for p in folded_params]

    out = pl.pallas_call(
        deep_feature_kernel,
        out_shape=jax.ShapeDtypeStruct((Bp, DL_LAYERS[-1]), jnp.float32),
        grid_spec=pltpu.PrefetchScalarGridSpec(
            num_scalar_prefetch=0,
            grid=(Bp // tb,),
            in_specs=[pl.BlockSpec((tb, INPUT_DIM), lambda i: (i, 0))]
                     + param_specs,
            out_specs=pl.BlockSpec((tb, DL_LAYERS[-1]), lambda i: (i, 0)),
        ),
        compiler_params=pltpu.CompilerParams(
            dimension_semantics=("parallel",),      # 2 TCs on v7x; no-op v5e/v6e
            vmem_limit_bytes=32 * 1024 * 1024,      # ample headroom on all gens
        ),
    )(x, *folded_params)
    return out[:B]


def init_params(key):
    """Deterministic synthetic parameters matching the PyTorch module shapes.

    Linear weights are created as (in, out) (i.e. already transposed relative
    to torch's (out, in) storage) so the kernel can do x @ W + b directly.
    """
    dims = [INPUT_DIM] + DL_LAYERS
    params = []
    for li in range(3):
        fan_in, fan_out = dims[li], dims[li + 1]
        key, kw, kb, kg, kbe, km, kv = jax.random.split(key, 7)
        bound = 1.0 / jnp.sqrt(jnp.float32(fan_in))
        w = jax.random.uniform(kw, (fan_in, fan_out), jnp.float32, -bound, bound)
        b = jax.random.uniform(kb, (1, fan_out), jnp.float32, -bound, bound)
        gamma = 1.0 + 0.1 * jax.random.normal(kg, (1, fan_out), jnp.float32)
        beta = 0.1 * jax.random.normal(kbe, (1, fan_out), jnp.float32)
        rmean = 0.1 * jax.random.normal(km, (1, fan_out), jnp.float32)
        rvar = 1.0 + 0.1 * jnp.abs(jax.random.normal(kv, (1, fan_out), jnp.float32))
        params += [w, b, gamma, beta, rmean, rvar]
    return tuple(params)


def reference_forward(x, params):
    """Pure-JAX reference of the eval-mode forward (un-folded BN)."""
    h = x
    for li in range(3):
        w, b, g, be, m, v = params[6 * li: 6 * (li + 1)]
        h = h @ w + b
        h = jnp.maximum((h - m) * (g * lax.rsqrt(v + BN_EPS)) + be, 0.0)
    return h


if __name__ == "__main__":
    key = jax.random.PRNGKey(0)
    kx, kp = jax.random.split(key)

    params = init_params(kp)
    folded = fold_bn_params(params)

    # Small batch: single tile, no padding.
    B = 8
    x = jax.random.normal(kx, (B, INPUT_DIM), jnp.float32)
    out = jax.block_until_ready(deep_feature_extractor(x, folded))
    ref = reference_forward(x, params)
    assert out.shape == (B, DL_LAYERS[-1])
    assert jnp.allclose(out, ref, atol=1e-3, rtol=1e-3)

    # Ragged multi-tile batch: exercises grid > 1 and padded last tile.
    B2 = 37
    x2 = jax.random.normal(jax.random.PRNGKey(1), (B2, INPUT_DIM), jnp.float32)
    out2 = jax.block_until_ready(deep_feature_extractor(x2, folded, tile_b=16))
    ref2 = reference_forward(x2, params)
    assert out2.shape == (B2, DL_LAYERS[-1])
    assert jnp.allclose(out2, ref2, atol=1e-3, rtol=1e-3)

    print("KERNEL_OK")
</pallas_src>

<mosaic_0001>
module attributes {stable_mosaic.version = 11 : i64} {
  func.func @deep_feature_kernel(%arg0: i32, %arg1: memref<8x7xf32, #tpu.memory_space<vmem>>, %arg2: memref<7x128xf32, #tpu.memory_space<vmem>>, %arg3: memref<1x128xf32, #tpu.memory_space<vmem>>, %arg4: memref<128x64xf32, #tpu.memory_space<vmem>>, %arg5: memref<1x64xf32, #tpu.memory_space<vmem>>, %arg6: memref<64x32xf32, #tpu.memory_space<vmem>>, %arg7: memref<1x32xf32, #tpu.memory_space<vmem>>, %arg8: memref<8x32xf32, #tpu.memory_space<vmem>>) attributes {dimension_semantics = [#tpu.dimension_semantics<parallel>], iteration_bounds = array<i64: 1>, scalar_prefetch = 0 : i64, scratch_operands = 0 : i64, tpu.core_type = #tpu.core_type<tc>, window_params = [{transform_indices = @transform_0, window_bounds = array<i64: 8, 7>}, {pipeline_mode = #tpu.pipeline_mode<synchronous>, transform_indices = @transform_1, window_bounds = array<i64: 7, 128>}, {pipeline_mode = #tpu.pipeline_mode<synchronous>, transform_indices = @transform_2, window_bounds = array<i64: 1, 128>}, {pipeline_mode = #tpu.pipeline_mode<synchronous>, transform_indices = @transform_3, window_bounds = array<i64: 128, 64>}, {pipeline_mode = #tpu.pipeline_mode<synchronous>, transform_indices = @transform_4, window_bounds = array<i64: 1, 64>}, {pipeline_mode = #tpu.pipeline_mode<synchronous>, transform_indices = @transform_5, window_bounds = array<i64: 64, 32>}, {pipeline_mode = #tpu.pipeline_mode<synchronous>, transform_indices = @transform_6, window_bounds = array<i64: 1, 32>}, {transform_indices = @transform_7, window_bounds = array<i64: 8, 32>}]} {
    %c0 = arith.constant 0 : index
    %c0_0 = arith.constant 0 : index
    %0 = vector.load %arg1[%c0, %c0_0] : memref<8x7xf32, #tpu.memory_space<vmem>>, vector<8x7xf32>
    %c0_1 = arith.constant 0 : index
    %c0_2 = arith.constant 0 : index
    %1 = vector.load %arg2[%c0_1, %c0_2] : memref<7x128xf32, #tpu.memory_space<vmem>>, vector<7x128xf32>
    %cst = arith.constant dense<0.000000e+00> : vector<8x128xf32>
    %2 = tpu.matmul %0, %1, %cst {dimension_numbers = #tpu.dot_dimension_numbers<[1], [0], [0], [1], [0, 0, 1, 1], [], []>} : vector<8x7xf32>, vector<7x128xf32>, vector<8x128xf32> -> vector<8x128xf32>
    %c0_3 = arith.constant 0 : index
    %c0_4 = arith.constant 0 : index
    %3 = vector.load %arg3[%c0_3, %c0_4] : memref<1x128xf32, #tpu.memory_space<vmem>>, vector<1x128xf32>
    %4 = vector.broadcast %3 : vector<1x128xf32> to vector<8x128xf32>
    %5 = arith.addf %2, %4 : vector<8x128xf32>
    %cst_5 = arith.constant 0.000000e+00 : f32
    %6 = vector.broadcast %cst_5 : f32 to vector<8x128xf32>
    %7 = arith.maximumf %5, %6 : vector<8x128xf32>
    %c0_6 = arith.constant 0 : index
    %c0_7 = arith.constant 0 : index
    %8 = vector.load %arg4[%c0_6, %c0_7] : memref<128x64xf32, #tpu.memory_space<vmem>>, vector<128x64xf32>
    %cst_8 = arith.constant dense<0.000000e+00> : vector<8x64xf32>
    %9 = tpu.matmul %7, %8, %cst_8 {dimension_numbers = #tpu.dot_dimension_numbers<[1], [0], [0], [1], [0, 0, 1, 1], [], []>} : vector<8x128xf32>, vector<128x64xf32>, vector<8x64xf32> -> vector<8x64xf32>
    %c0_9 = arith.constant 0 : index
    %c0_10 = arith.constant 0 : index
    %10 = vector.load %arg5[%c0_9, %c0_10] : memref<1x64xf32, #tpu.memory_space<vmem>>, vector<1x64xf32>
    %11 = vector.broadcast %10 : vector<1x64xf32> to vector<8x64xf32>
    %12 = arith.addf %9, %11 : vector<8x64xf32>
    %cst_11 = arith.constant 0.000000e+00 : f32
    %13 = vector.broadcast %cst_11 : f32 to vector<8x64xf32>
    %14 = arith.maximumf %12, %13 : vector<8x64xf32>
    %c0_12 = arith.constant 0 : index
    %c0_13 = arith.constant 0 : index
    %15 = vector.load %arg6[%c0_12, %c0_13] : memref<64x32xf32, #tpu.memory_space<vmem>>, vector<64x32xf32>
    %cst_14 = arith.constant dense<0.000000e+00> : vector<8x32xf32>
    %16 = tpu.matmul %14, %15, %cst_14 {dimension_numbers = #tpu.dot_dimension_numbers<[1], [0], [0], [1], [0, 0, 1, 1], [], []>} : vector<8x64xf32>, vector<64x32xf32>, vector<8x32xf32> -> vector<8x32xf32>
    %c0_15 = arith.constant 0 : index
    %c0_16 = arith.constant 0 : index
    %17 = vector.load %arg7[%c0_15, %c0_16] : memref<1x32xf32, #tpu.memory_space<vmem>>, vector<1x32xf32>
    %18 = vector.broadcast %17 : vector<1x32xf32> to vector<8x32xf32>
    %19 = arith.addf %16, %18 : vector<8x32xf32>
    %cst_17 = arith.constant 0.000000e+00 : f32
    %20 = vector.broadcast %cst_17 : f32 to vector<8x32xf32>
    %21 = arith.maximumf %19, %20 : vector<8x32xf32>
    %c0_18 = arith.constant 0 : index
    %c0_19 = arith.constant 0 : index
    %22 = vector.load %arg8[%c0_18, %c0_19] : memref<8x32xf32, #tpu.memory_space<vmem>>, vector<8x32xf32>
    tpu.vector_store %arg8[%c0_18, %c0_19], %21 {strides = array<i32>} : memref<8x32xf32, #tpu.memory_space<vmem>>, vector<8x32xf32>,
    return
  }
  func.func @transform_0(%arg0: i32) -> (i32, i32) {
    %c0_i32 = arith.constant 0 : i32
    %c0_i32_0 = arith.constant 0 : i32
    return %arg0, %c0_i32 : i32, i32
  }
  func.func @transform_1(%arg0: i32) -> (i32, i32) {
    %c0_i32 = arith.constant 0 : i32
    %c0_i32_0 = arith.constant 0 : i32
    %c0_i32_1 = arith.constant 0 : i32
    return %c0_i32, %c0_i32_0 : i32, i32
  }
  func.func @transform_2(%arg0: i32) -> (i32, i32) {
    %c0_i32 = arith.constant 0 : i32
    %c0_i32_0 = arith.constant 0 : i32
    %c0_i32_1 = arith.constant 0 : i32
    return %c0_i32, %c0_i32_0 : i32, i32
  }
  func.func @transform_3(%arg0: i32) -> (i32, i32) {
    %c0_i32 = arith.constant 0 : i32
    %c0_i32_0 = arith.constant 0 : i32
    %c0_i32_1 = arith.constant 0 : i32
    return %c0_i32, %c0_i32_0 : i32, i32
  }
  func.func @transform_4(%arg0: i32) -> (i32, i32) {
    %c0_i32 = arith.constant 0 : i32
    %c0_i32_0 = arith.constant 0 : i32
    %c0_i32_1 = arith.constant 0 : i32
    return %c0_i32, %c0_i32_0 : i32, i32
  }
  func.func @transform_5(%arg0: i32) -> (i32, i32) {
    %c0_i32 = arith.constant 0 : i32
    %c0_i32_0 = arith.constant 0 : i32
    %c0_i32_1 = arith.constant 0 : i32
    return %c0_i32, %c0_i32_0 : i32, i32
  }
  func.func @transform_6(%arg0: i32) -> (i32, i32) {
    %c0_i32 = arith.constant 0 : i32
    %c0_i32_0 = arith.constant 0 : i32
    %c0_i32_1 = arith.constant 0 : i32
    return %c0_i32, %c0_i32_0 : i32, i32
  }
  func.func @transform_7(%arg0: i32) -> (i32, i32) {
    %c0_i32 = arith.constant 0 : i32
    %c0_i32_0 = arith.constant 0 : i32
    return %arg0, %c0_i32 : i32, i32
  }
}

</mosaic_0001>

<llo_original>
// kernel: deep_feature_extractor.1
$region0: #{deep_feature_extractor.1}
  #allocation0 [shape = 'u32[]', space=smem, size = 0x4, offset = 0x4, fixed_abs, tag = 'smem constant byte address 0x4 - core index']
  #allocation1 [shape = 'u32[144,128]{1,0:T(1,128)}', space=vmem, size = 0x12000, scoped, tag = 'internal scratch']
  %s0 = inlined_call_operand.vmem [shape: f32[8,7], index: 0, kind: input, shape index: {}]
  %s1 = inlined_call_operand.vmem [shape: f32[7,128], index: 1, kind: input, shape index: {}]
  %s2 = inlined_call_operand.vmem [shape: f32[1,128], index: 2, kind: input, shape index: {}]
  %s3 = inlined_call_operand.vmem [shape: f32[128,64], index: 3, kind: input, shape index: {}]
  %s4 = inlined_call_operand.vmem [shape: f32[1,64], index: 4, kind: input, shape index: {}]
  %s5 = inlined_call_operand.vmem [shape: f32[64,32], index: 5, kind: input, shape index: {}]
  %s6 = inlined_call_operand.vmem [shape: f32[1,32], index: 6, kind: input, shape index: {}]
  %s7 = inlined_call_operand.hbm [shape: f32[8,32], index: 7, kind: output, shape index: {}]
  %s8 = sld [smem:[#allocation0]]
  $region38: #{deep_feature_extractor.1} parent=0
    _
  %s10 = ssub.s32 1, %s8
  %s11 = scalar_select 0, %s10, %s8
  $region1: #{deep_feature_extractor.1} parent=0
    #allocation2 [shape = 'u8[4096]{0}', space=vmem, size = 0x1000, scoped, tag = 'output window, operand 0, single buffered']
    #allocation3 [shape = 's32[1]{0}', space=sflag, size = 0x4, scoped, tag = 'scoped memory for deep_feature_extractor.1']
    %12 = vsyncpa [#allocation3], 0
    // Predicated region
    $region2: #{deep_feature_extractor.1} parent=1 // pred_check
      _
    $region3: #{deep_feature_extractor.1} parent=1 // pred_check_branch
      %14 = sbr.rel (0) target = $region5
    $region4: #{deep_feature_extractor.1} parent=1 // pred_region
      _
    $region5: #{deep_feature_extractor.1} parent=1 // pred_fallthru
      _
    // Predicated region
    $region6: #{deep_feature_extractor.1} parent=1 // pred_check
      _
    $region7: #{deep_feature_extractor.1} parent=1 // pred_check_branch
      %16 = sbr.rel (0) target = $region9
    $region8: #{deep_feature_extractor.1} parent=1 // pred_region
      _
    $region9: #{deep_feature_extractor.1} parent=1 // pred_fallthru
      _
    // Predicated region
    $region10: #{deep_feature_extractor.1} parent=1 // pred_check
      _
    $region11: #{deep_feature_extractor.1} parent=1 // pred_check_branch
      %18 = sbr.rel (0) target = $region13
    $region12: #{deep_feature_extractor.1} parent=1 // pred_region
      _
    $region13: #{deep_feature_extractor.1} parent=1 // pred_fallthru
      _
    // Predicated region
    $region14: #{deep_feature_extractor.1} parent=1 // pred_check
      _
    $region15: #{deep_feature_extractor.1} parent=1 // pred_check_branch
      %20 = sbr.rel (0) target = $region17
    $region16: #{deep_feature_extractor.1} parent=1 // pred_region
      _
    $region17: #{deep_feature_extractor.1} parent=1 // pred_fallthru
      _
    // Predicated region
    $region18: #{deep_feature_extractor.1} parent=1 // pred_check
      _
    $region19: #{deep_feature_extractor.1} parent=1 // pred_check_branch
      %22 = sbr.rel (0) target = $region21
    $region20: #{deep_feature_extractor.1} parent=1 // pred_region
      _
    $region21: #{deep_feature_extractor.1} parent=1 // pred_fallthru
      _
    // Predicated region
    $region22: #{deep_feature_extractor.1} parent=1 // pred_check
      _
    $region23: #{deep_feature_extractor.1} parent=1 // pred_check_branch
      %24 = sbr.rel (0) target = $region25
    $region24: #{deep_feature_extractor.1} parent=1 // pred_region
      _
    $region25: #{deep_feature_extractor.1} parent=1 // pred_fallthru
      _
    // Predicated region
    $region26: #{deep_feature_extractor.1} parent=1 // pred_check
      _
    $region27: #{deep_feature_extractor.1} parent=1 // pred_check_branch
      %26 = sbr.rel (0) target = $region29
    $region28: #{deep_feature_extractor.1} parent=1 // pred_region
      _
    $region29: #{deep_feature_extractor.1} parent=1 // pred_fallthru
      _
    %v27 = vld [vmem:[%s0] sm:$0xff]
    %v28 = vld [vmem:[%s1] sm:$0x7f]
    %v29 = vld [vmem:[%s2] sm:$0x1]
    %v31 = vlaneseq
    %v32 = vshrl.u32 %v31, 7
    %v33 = vsub.s32 0, %v32
    %v34 = vrot.slane %v29, %v33
    %vm36 = vcmask 56320
    %v38 = vsel %vm36, %v27, 0
    %vm40 = vcmask 1046528
    %v42 = vsel %vm40, %v28, 0
    %44 = vmatprep.subr.mxu0 0.0
    %45 = vmatpush1.msra.mxu0 0.0
    %46 = vmatprep.subr.mxu0 0.0
    %47 = vmatpush1.msra.mxu0 0.0
    %48 = vmatprep.subr.mxu0 0.0
    %49 = vmatpush1.msra.mxu0 0.0
    %50 = vmatprep.subr.mxu0 0.0
    %51 = vmatpush1.msra.mxu0 0.0
    %52 = vmatprep.subr.mxu0 0.0
    %53 = vmatpush1.msra.mxu0 0.0
    %54 = vmatprep.subr.mxu0 0.0
    %55 = vmatpush1.msra.mxu0 0.0
    %56 = vmatprep.subr.mxu0 0.0
    %57 = vmatpush1.msra.mxu0 0.0
    %58 = vmatprep.subr.mxu0 0.0
    %59 = vmatpush1.msra.mxu0 0.0
    %60 = vmatprep.subr.mxu0 0.0
    %61 = vmatpush1.msra.mxu0 0.0
    %62 = vmatprep.subr.mxu0 0.0
    %63 = vmatpush1.msra.mxu0 0.0
    %64 = vmatprep.subr.mxu0 0.0
    %65 = vmatpush1.msra.mxu0 0.0
    %66 = vmatprep.subr.mxu0 0.0
    %67 = vmatpush1.msra.mxu0 0.0
    %68 = vmatprep.subr.mxu0 0.0
    %69 = vmatpush1.msra.mxu0 0.0
    %70 = vmatprep.subr.mxu0 0.0
    %71 = vmatpush1.msra.mxu0 0.0
    %72 = vmatprep.subr.mxu0 0.0
    %73 = vmatpush1.msra.mxu0 0.0
    %74 = vmatprep.subr.mxu0 0.0
    %75 = vmatpush1.msra.mxu0 %v42
    %76 = vmatprep.subr.mxu0 0.0
    %77 = vmatpush2.msra.mxu0 0.0
    %78 = vmatprep.subr.mxu0 0.0
    %79 = vmatpush2.msra.mxu0 0.0
    %80 = vmatprep.subr.mxu0 0.0
    %81 = vmatpush2.msra.mxu0 0.0
    %82 = vmatprep.subr.mxu0 0.0
    %83 = vmatpush2.msra.mxu0 0.0
    %84 = vmatprep.subr.mxu0 0.0
    %85 = vmatpush2.msra.mxu0 0.0
    %86 = vmatprep.subr.mxu0 0.0
    %87 = vmatpush2.msra.mxu0 0.0
    %88 = vmatprep.subr.mxu0 0.0
    %89 = vmatpush2.msra.mxu0 0.0
    %90 = vmatprep.subr.mxu0 0.0
    %91 = vmatpush2.msra.mxu0 0.0
    %92 = vmatprep.subr.mxu0 0.0
    %93 = vmatpush2.msra.mxu0 0.0
    %94 = vmatprep.subr.mxu0 0.0
    %95 = vmatpush2.msra.mxu0 0.0
    %96 = vmatprep.subr.mxu0 0.0
    %97 = vmatpush2.msra.mxu0 0.0
    %98 = vmatprep.subr.mxu0 0.0
    %99 = vmatpush2.msra.mxu0 0.0
    %100 = vmatprep.subr.mxu0 0.0
    %101 = vmatpush2.msra.mxu0 0.0
    %102 = vmatprep.subr.mxu0 0.0
    %103 = vmatpush2.msra.mxu0 0.0
    %104 = vmatprep.subr.mxu0 0.0
    %105 = vmatpush2.msra.mxu0 0.0
    %106 = vmatprep.subr.mxu0 0.0
    %107 = vmatpush2.msra.mxu0 0.0
    %108 = vmatprep.mubr.f32.mxu0 0.0
    %109 = vmatmul.mubr.f32.gmra.mxu0 %v38
    %v110 = vpop.f32.mrf.mxu0
    %v111 = vadd.f32 %v34, %v110
    %v112 = vpop.f32.mrf.mxu0
    %113 = vdwg.mxu0
    %v114 = vmax.f32 %v111, 0.0
    %v115 = vld [vmem:[%s3] sm:$0xff]
    %v116 = vld [vmem:[%s3 + $0x8] sm:$0xff]
    %v117 = vld [vmem:[%s3 + $0x10] sm:$0xff]
    %v118 = vld [vmem:[%s3 + $0x18] sm:$0xff]
    %v119 = vld [vmem:[%s3 + $0x20] sm:$0xff]
    %v120 = vld [vmem:[%s3 + $0x28] sm:$0xff]
    %v121 = vld [vmem:[%s3 + $0x30] sm:$0xff]
    %v122 = vld [vmem:[%s3 + $0x38] sm:$0xff]
    %v123 = vld [vmem:[%s3 + $0x40] sm:$0xff]
    %v124 = vld [vmem:[%s3 + $0x48] sm:$0xff]
    %v125 = vld [vmem:[%s3 + $0x50] sm:$0xff]
    %v126 = vld [vmem:[%s3 + $0x58] sm:$0xff]
    %v127 = vld [vmem:[%s3 + $0x60] sm:$0xff]
    %v128 = vld [vmem:[%s3 + $0x68] sm:$0xff]
    %v129 = vld [vmem:[%s3 + $0x70] sm:$0xff]
    %v130 = vld [vmem:[%s3 + $0x78] sm:$0xff]
    %v131 = vld [vmem:[%s4] sm:$0x1]
    %v133 = vlaneseq
    %v134 = vshrl.u32 %v133, 7
    %v135 = vsub.s32 0, %v134
    %v136 = vrot.slane %v131, %v135
    %138 = vmatprep.subr.mxu0 0.0
    %139 = vmatpush1.msra.mxu0 %v130
    %140 = vmatprep.subr.mxu0 0.0
    %141 = vmatpush1.msra.mxu0 %v129
    %142 = vmatprep.subr.mxu0 0.0
    %143 = vmatpush1.msra.mxu0 %v128
    %144 = vmatprep.subr.mxu0 0.0
    %145 = vmatpush1.msra.mxu0 %v127
    %146 = vmatprep.subr.mxu0 0.0
    %147 = vmatpush1.msra.mxu0 %v126
    %148 = vmatprep.subr.mxu0 0.0
    %149 = vmatpush1.msra.mxu0 %v125
    %150 = vmatprep.subr.mxu0 0.0
    %151 = vmatpush1.msra.mxu0 %v124
    %152 = vmatprep.subr.mxu0 0.0
    %153 = vmatpush1.msra.mxu0 %v123
    %154 = vmatprep.subr.mxu0 0.0
    %155 = vmatpush1.msra.mxu0 %v122
    %156 = vmatprep.subr.mxu0 0.0
    %157 = vmatpush1.msra.mxu0 %v121
    %158 = vmatprep.subr.mxu0 0.0
    %159 = vmatpush1.msra.mxu0 %v120
    %160 = vmatprep.subr.mxu0 0.0
    %161 = vmatpush1.msra.mxu0 %v119
    %162 = vmatprep.subr.mxu0 0.0
    %163 = vmatpush1.msra.mxu0 %v118
    %164 = vmatprep.subr.mxu0 0.0
    %165 = vmatpush1.msra.mxu0 %v117
    %166 = vmatprep.subr.mxu0 0.0
    %167 = vmatpush1.msra.mxu0 %v116
    %168 = vmatprep.subr.mxu0 0.0
    %169 = vmatpush1.msra.mxu0 %v115
    %170 = vmatprep.subr.mxu0 0.0
    %171 = vmatpush2.msra.mxu0 0.0
    %172 = vmatprep.subr.mxu0 0.0
    %173 = vmatpush2.msra.mxu0 0.0
    %174 = vmatprep.subr.mxu0 0.0
    %175 = vmatpush2.msra.mxu0 0.0
    %176 = vmatprep.subr.mxu0 0.0
    %177 = vmatpush2.msra.mxu0 0.0
    %178 = vmatprep.subr.mxu0 0.0
    %179 = vmatpush2.msra.mxu0 0.0
    %180 = vmatprep.subr.mxu0 0.0
    %181 = vmatpush2.msra.mxu0 0.0
    %182 = vmatprep.subr.mxu0 0.0
    %183 = vmatpush2.msra.mxu0 0.0
    %184 = vmatprep.subr.mxu0 0.0
    %185 = vmatpush2.msra.mxu0 0.0
    %186 = vmatprep.subr.mxu0 0.0
    %187 = vmatpush2.msra.mxu0 0.0
    %188 = vmatprep.subr.mxu0 0.0
    %189 = vmatpush2.msra.mxu0 0.0
    %190 = vmatprep.subr.mxu0 0.0
    %191 = vmatpush2.msra.mxu0 0.0
    %192 = vmatprep.subr.mxu0 0.0
    %193 = vmatpush2.msra.mxu0 0.0
    %194 = vmatprep.subr.mxu0 0.0
    %195 = vmatpush2.msra.mxu0 0.0
    %196 = vmatprep.subr.mxu0 0.0
    %197 = vmatpush2.msra.mxu0 0.0
    %198 = vmatprep.subr.mxu0 0.0
    %199 = vmatpush2.msra.mxu0 0.0
    %200 = vmatprep.subr.mxu0 0.0
    %201 = vmatpush2.msra.mxu0 0.0
    %202 = vmatprep.mubr.f32.mxu0 0.0
    %203 = vmatmul.mubr.f32.gmra.mxu0 %v114
    %v204 = vpop.f32.mrf.mxu0
    %v205 = vadd.f32 %v136, %v204
    %v206 = vpop.f32.mrf.mxu0
    %207 = vdwg.mxu0
    %v208 = vmax.f32 %v205, 0.0
    %v209 = vld [vmem:[%s5] sm:$0xff]
    %v210 = vld [vmem:[%s5 + $0x8] sm:$0xff]
    %v211 = vld [vmem:[%s5 + $0x10] sm:$0xff]
    %v212 = vld [vmem:[%s5 + $0x18] sm:$0xff]
    %v213 = vld [vmem:[%s5 + $0x20] sm:$0xff]
    %v214 = vld [vmem:[%s5 + $0x28] sm:$0xff]
    %v215 = vld [vmem:[%s5 + $0x30] sm:$0xff]
    %v216 = vld [vmem:[%s5 + $0x38] sm:$0xff]
    %v217 = vld [vmem:[%s6] sm:$0x1]
    %v219 = vlaneseq
    %v220 = vshrl.u32 %v219, 7
    %v221 = vsub.s32 0, %v220
    %v222 = vrot.slane %v217, %v221
    %vm224 = vcmask 523264
    %v226 = vsel %vm224, %v208, 0
    %228 = vmatprep.subr.mxu0 0.0
    %229 = vmatpush1.msra.mxu0 0.0
    %230 = vmatprep.subr.mxu0 0.0
    %231 = vmatpush1.msra.mxu0 0.0
    %232 = vmatprep.subr.mxu0 0.0
    %233 = vmatpush1.msra.mxu0 0.0
    %234 = vmatprep.subr.mxu0 0.0
    %235 = vmatpush1.msra.mxu0 0.0
    %236 = vmatprep.subr.mxu0 0.0
    %237 = vmatpush1.msra.mxu0 0.0
    %238 = vmatprep.subr.mxu0 0.0
    %239 = vmatpush1.msra.mxu0 0.0
    %240 = vmatprep.subr.mxu0 0.0
    %241 = vmatpush1.msra.mxu0 0.0
    %242 = vmatprep.subr.mxu0 0.0
    %243 = vmatpush1.msra.mxu0 0.0
    %244 = vmatprep.subr.mxu0 0.0
    %245 = vmatpush1.msra.mxu0 %v216
    %246 = vmatprep.subr.mxu0 0.0
    %247 = vmatpush1.msra.mxu0 %v215
    %248 = vmatprep.subr.mxu0 0.0
    %249 = vmatpush1.msra.mxu0 %v214
    %250 = vmatprep.subr.mxu0 0.0
    %251 = vmatpush1.msra.mxu0 %v213
    %252 = vmatprep.subr.mxu0 0.0
    %253 = vmatpush1.msra.mxu0 %v212
    %254 = vmatprep.subr.mxu0 0.0
    %255 = vmatpush1.msra.mxu0 %v211
    %256 = vmatprep.subr.mxu0 0.0
    %257 = vmatpush1.msra.mxu0 %v210
    %258 = vmatprep.subr.mxu0 0.0
    %259 = vmatpush1.msra.mxu0 %v209
    %260 = vmatprep.subr.mxu0 0.0
    %261 = vmatpush2.msra.mxu0 0.0
    %262 = vmatprep.subr.mxu0 0.0
    %263 = vmatpush2.msra.mxu0 0.0
    %264 = vmatprep.subr.mxu0 0.0
    %265 = vmatpush2.msra.mxu0 0.0
    %266 = vmatprep.subr.mxu0 0.0
    %267 = vmatpush2.msra.mxu0 0.0
    %268 = vmatprep.subr.mxu0 0.0
    %269 = vmatpush2.msra.mxu0 0.0
    %270 = vmatprep.subr.mxu0 0.0
    %271 = vmatpush2.msra.mxu0 0.0
    %272 = vmatprep.subr.mxu0 0.0
    %273 = vmatpush2.msra.mxu0 0.0
    %274 = vmatprep.subr.mxu0 0.0
    %275 = vmatpush2.msra.mxu0 0.0
    %276 = vmatprep.subr.mxu0 0.0
    %277 = vmatpush2.msra.mxu0 0.0
    %278 = vmatprep.subr.mxu0 0.0
    %279 = vmatpush2.msra.mxu0 0.0
    %280 = vmatprep.subr.mxu0 0.0
    %281 = vmatpush2.msra.mxu0 0.0
    %282 = vmatprep.subr.mxu0 0.0
    %283 = vmatpush2.msra.mxu0 0.0
    %284 = vmatprep.subr.mxu0 0.0
    %285 = vmatpush2.msra.mxu0 0.0
    %286 = vmatprep.subr.mxu0 0.0
    %287 = vmatpush2.msra.mxu0 0.0
    %288 = vmatprep.subr.mxu0 0.0
    %289 = vmatpush2.msra.mxu0 0.0
    %290 = vmatprep.subr.mxu0 0.0
    %291 = vmatpush2.msra.mxu0 0.0
    %292 = vmatprep.mubr.f32.mxu0 0.0
    %293 = vmatmul.mubr.f32.gmra.mxu0 %v226
    %v294 = vpop.f32.mrf.mxu0
    %v295 = vadd.f32 %v222, %v294
    %v296 = vpop.f32.mrf.mxu0
    %297 = vdwg.mxu0
    %v298 = vmax.f32 %v295, 0.0
    %vm299 = vcmask 261120
    %300 = vst.msk [vmem:[#allocation2] sm:$0xff] %vm299, %v298
    // Predicated region
    $region30: #{deep_feature_extractor.1} parent=1 // pred_check
      _
    $region31: #{deep_feature_extractor.1} parent=1 // pred_check_branch
      %302 = sbr.rel (0) target = $region33
    $region32: #{deep_feature_extractor.1} parent=1 // pred_region
      %s304 = ssub.s32 128, 128
      %305 = vsyncadd [#allocation3], %s304
      %s307 = sshll.u32 [#allocation2], 4
      %s308 = int_to_ptr.vmem [resolvable:$true] %s307
      %310 = dma.vmem_to_hbm [thread:$0]  %s308, 128, %s7, [#allocation3]
    $region33: #{deep_feature_extractor.1} parent=1 // pred_fallthru
      _
    // Predicated region
    $region34: #{deep_feature_extractor.1} parent=1 // pred_check
      _
    $region35: #{deep_feature_extractor.1} parent=1 // pred_check_branch
      %312 = sbr.rel (0) target = $region37
    $region36: #{deep_feature_extractor.1} parent=1 // pred_region
      %313 = dma.done [#allocation3], 128
    $region37: #{deep_feature_extractor.1} parent=1 // pred_fallthru
      _
    %314 = vsyncpa [#allocation3], 1

</llo_original>
